<compile_context>
chip_gen: v7x
topology: tpu7x:2x2x1
jax: 0.10.0
libtpu: 0.0.40
codegen_flags: <defaults>
</compile_context>

<pallas_src>
import math

import jax
import jax.numpy as jnp
from jax.experimental import pallas as pl
from jax.experimental.pallas import tpu as pltpu


def _const_kernel(w_ref, o_ref):
    # w_ref: (1, TV)  -- one lane-dense chunk of the stored volume.
    # o_ref: (BN, TV) -- output slab covering BN batch slots of that chunk.
    # Broadcast along the sublane (batch) axis; pure VPU/store work.
    o_ref[...] = jnp.broadcast_to(w_ref[...], o_ref.shape)


# Outputs smaller than this skip Pallas entirely (launch cost >> HBM traffic).
_SMALL_OUTPUT_BYTES = 1 * 1024 * 1024


def _vmem_model():
    """Return (pipeline buffer budget, vmem_limit_bytes, two_tensorcores)."""
    try:
        phys = int(pltpu.get_tpu_info().vmem_capacity_bytes)
    except Exception:  # no TPU / interpret mode: assume the smallest (v7x/TC)
        phys = 64 * 1024 * 1024
    budget = int(phys * 0.70)   # what we size pipeline buffers against
    limit = int(phys * 0.80)    # scoped VMEM limit handed to the compiler
    # v7x exposes 64 MiB per TensorCore and has 2 TCs/chip; v5e/v6e expose
    # 128 MiB with a single TC. Use VMEM capacity as a robust proxy.
    two_cores = phys <= 80 * 1024 * 1024
    return budget, limit, two_cores


def _pick_tiles(n, vol_pad, itemsize, budget_bytes, two_cores):
    """Pick (bn, tv): batch rows and lane columns per grid step."""
    lane = 128

    # --- lane (volume) tile --------------------------------------------
    # Prefer the whole padded volume as one lane-dense tile; shrink it (in
    # multiples of 128 lanes) only when weight tile + 2 output buffers of
    # min(8, n) rows would blow the pipeline budget (huge volumes).
    rows_floor = min(8, n)
    max_tv_elems = budget_bytes // (itemsize * (1 + 2 * rows_floor))
    tv = min(vol_pad, max(lane, (max_tv_elems // lane) * lane))
    tv_bytes = tv * itemsize
    grid_v = pl.cdiv(vol_pad, tv)

    # --- sublane (batch) tile ------------------------------------------
    avail = max(budget_bytes - tv_bytes, 2 * tv_bytes)  # guard against tiny budgets
    max_bn = max(1, avail // (2 * tv_bytes))

    if n <= 8:
        bn = n
    else:
        # Work in groups of 8 rows so interior blocks stay sublane-aligned.
        min_steps = 8 if two_cores else 4                 # >= ~4 steps per core
        min_bn = max(1, (1 * 1024 * 1024) // tv_bytes)    # blocks >= ~1 MiB
        g_max = max(1, max_bn // 8)                       # >= 1 by tv construction
        g_target = max(pl.cdiv(pl.cdiv(n, min_steps), 8), pl.cdiv(min_bn, 8))
        g = max(1, min(g_max, g_target, pl.cdiv(n, 8)))
        bn = g * 8
        if bn >= n:
            bn = n
            # 2-TC chips only: split a single-step grid across both cores when
            # each half slab is big enough (~2 MiB) to amortize step overhead.
            half = pl.cdiv(n, 2)
            if two_cores and grid_v == 1 and half * tv_bytes >= 2 * 1024 * 1024:
                bn = min(n, -(-half // 8) * 8)
    return int(bn), int(tv)


def const_forward(weight: jax.Array, n: int, *, use_pallas=None) -> jax.Array:
    """Pallas equivalent of Const.forward(n): (1, *size) -> (n, *size)."""
    assert weight.shape[0] == 1
    size = weight.shape[1:]
    vol = int(math.prod(size))
    itemsize = jnp.dtype(weight.dtype).itemsize
    out_bytes = n * vol * itemsize

    # Fast path: tiny outputs are faster as a plain XLA broadcast.
    if use_pallas is None:
        use_pallas = out_bytes >= _SMALL_OUTPUT_BYTES
    if not use_pallas:
        return jnp.broadcast_to(weight, (n,) + size)

    # Lane-dense layout: flatten the volume; pad the lane dim to a multiple of
    # 128 so output stores are full-lane (unmasked) vst.
    vol_pad = -(-vol // 128) * 128
    w_flat = weight.reshape(1, vol)
    if vol_pad != vol:
        w_flat = jnp.pad(w_flat, ((0, 0), (0, vol_pad - vol)))

    budget, vmem_limit, two_cores = _vmem_model()
    bn, tv = _pick_tiles(n, vol_pad, itemsize, budget, two_cores)
    grid_v = pl.cdiv(vol_pad, tv)   # 1 except for volumes larger than VMEM budget
    grid_b = pl.cdiv(n, bn)

    out_flat = pl.pallas_call(
        _const_kernel,
        out_shape=jax.ShapeDtypeStruct((n, vol_pad), weight.dtype),
        grid_spec=pltpu.PrefetchScalarGridSpec(
            num_scalar_prefetch=0,
            # Batch is the fast axis so the weight's block index only changes
            # once per grid_b steps (and never when grid_v == 1).
            grid=(grid_v, grid_b),
            in_specs=[
                # Single-buffered: constant/slowly-varying index, save VMEM
                # for a larger output block.
                pl.BlockSpec((1, tv), lambda j, i: (0, j),
                             pipeline_mode=pl.Buffered(1)),
            ],
            out_specs=pl.BlockSpec((bn, tv), lambda j, i: (i, j)),
        ),
        compiler_params=pltpu.CompilerParams(
            dimension_semantics=("parallel", "parallel"),
            vmem_limit_bytes=vmem_limit,
        ),
        cost_estimate=pl.CostEstimate(
            flops=0,
            transcendentals=0,
            bytes_accessed=int((n + 1) * vol_pad * itemsize),
        ),
    )(w_flat)

    if vol_pad != vol:
        out_flat = out_flat[:, :vol]
    return out_flat.reshape((n,) + size)


if __name__ == "__main__":
    key = jax.random.PRNGKey(0)
    size = (4, 16, 16)
    weight = jax.random.normal(key, (1,) + size, dtype=jnp.float32)

    # 1) Module-default small call: n=2 (8 KiB output) -> broadcast fast path.
    n_small = 2
    out_small = jax.block_until_ready(const_forward(weight, n_small))
    ref_small = jnp.broadcast_to(weight, (n_small,) + size)
    assert out_small.shape == (n_small,) + size
    assert out_small.dtype == weight.dtype
    assert bool(jnp.array_equal(out_small, ref_small))

    # 2) Force the Pallas path at a modest batch so the kernel itself runs.
    n_big = 64
    out_big = jax.block_until_ready(const_forward(weight, n_big, use_pallas=True))
    ref_big = jnp.broadcast_to(weight, (n_big,) + size)
    assert out_big.shape == (n_big,) + size
    assert bool(jnp.array_equal(out_big, ref_big))

    # 3) Non-128-multiple volume (3*5*7=105) exercises the lane-padding path.
    size_odd = (3, 5, 7)
    w_odd = jax.random.normal(jax.random.PRNGKey(1), (1,) + size_odd, jnp.float32)
    n_odd = 16
    out_odd = jax.block_until_ready(const_forward(w_odd, n_odd, use_pallas=True))
    ref_odd = jnp.broadcast_to(w_odd, (n_odd,) + size_odd)
    assert out_odd.shape == (n_odd,) + size_odd
    assert bool(jnp.array_equal(out_odd, ref_odd))

    print("KERNEL_OK")
</pallas_src>

<mosaic_0001>
module attributes {stable_mosaic.version = 11 : i64} {
  func.func @_const_kernel(%arg0: i32, %arg1: i32, %arg2: memref<1x1024xf32, #tpu.memory_space<vmem>>, %arg3: memref<64x1024xf32, #tpu.memory_space<vmem>>) attributes {dimension_semantics = [#tpu.dimension_semantics<parallel>, #tpu.dimension_semantics<parallel>], iteration_bounds = array<i64: 1, 1>, scalar_prefetch = 0 : i64, scratch_operands = 0 : i64, tpu.core_type = #tpu.core_type<tc>, window_params = [{pipeline_mode = #tpu.pipeline_mode<synchronous>, transform_indices = @transform_0, window_bounds = array<i64: 1, 1024>}, {transform_indices = @transform_1, window_bounds = array<i64: 64, 1024>}]} {
    %c0 = arith.constant 0 : index
    %c0_0 = arith.constant 0 : index
    %0 = vector.load %arg2[%c0, %c0_0] : memref<1x1024xf32, #tpu.memory_space<vmem>>, vector<1x1024xf32>
    %1 = vector.shape_cast %0 : vector<1x1024xf32> to vector<1x1024xf32>
    %2 = vector.broadcast %1 : vector<1x1024xf32> to vector<64x1024xf32>
    %c0_1 = arith.constant 0 : index
    %c0_2 = arith.constant 0 : index
    %3 = vector.load %arg3[%c0_1, %c0_2] : memref<64x1024xf32, #tpu.memory_space<vmem>>, vector<64x1024xf32>
    tpu.vector_store %arg3[%c0_1, %c0_2], %2 {strides = array<i32>} : memref<64x1024xf32, #tpu.memory_space<vmem>>, vector<64x1024xf32>,
    return
  }
  func.func @transform_0(%arg0: i32, %arg1: i32) -> (i32, i32) {
    %c0_i32 = arith.constant 0 : i32
    %c0_i32_0 = arith.constant 0 : i32
    return %c0_i32, %arg0 : i32, i32
  }
  func.func @transform_1(%arg0: i32, %arg1: i32) -> (i32, i32) {
    %c0_i32 = arith.constant 0 : i32
    return %arg1, %arg0 : i32, i32
  }
}

</mosaic_0001>

<llo_original>
// kernel: tpu_custom_call.1
$region0: #{tpu_custom_call.1}
  #allocation0 [shape = 'u32[]', space=smem, size = 0x4, offset = 0x4, fixed_abs, tag = 'smem constant byte address 0x4 - core index']
  #allocation1 [shape = 'u32[144,128]{1,0:T(1,128)}', space=vmem, size = 0x12000, scoped, tag = 'internal scratch']
  %s0 = inlined_call_operand.hbm [shape: f32[1,1024], index: 0, kind: input, shape index: {}]
  %s1 = inlined_call_operand.hbm [shape: f32[64,1024], index: 1, kind: output, shape index: {}]
  %s2 = sld [smem:[#allocation0]]
  $region18: #{tpu_custom_call.1} parent=0
    _
  %s4 = ssub.s32 1, %s2
  %s5 = scalar_select 0, %s4, %s2
  $region1: #{tpu_custom_call.1} parent=0
    #allocation2 [shape = 'u8[4096]{0}', space=vmem, size = 0x1000, scoped, tag = 'input window, operand 0, single buffered']
    #allocation3 [shape = 's32[1]{0}', space=sflag, size = 0x4, scoped, tag = 'scoped memory for tpu_custom_call.1']
    #allocation4 [shape = 's32[1]{0}', space=sflag, size = 0x4, scoped, tag = 'scoped memory for tpu_custom_call.1']
    #allocation5 [shape = 'u8[262144]{0}', space=vmem, size = 0x40000, scoped, tag = 'output window, operand 0, single buffered']
    %6 = vsyncpa [#allocation3], 0
    %7 = vsyncpa [#allocation4], 0
    // Predicated region
    $region2: #{tpu_custom_call.1} parent=1 // pred_check
      _
    $region3: #{tpu_custom_call.1} parent=1 // pred_check_branch
      %9 = sbr.rel (0) target = $region5
    $region4: #{tpu_custom_call.1} parent=1 // pred_region
      %s11 = ssub.s32 128, 128
      %12 = vsyncadd [#allocation3], %s11
      %s14 = sshll.u32 [#allocation2], 4
      %s15 = int_to_ptr.vmem [resolvable:$true] %s14
      %17 = dma.hbm_to_vmem [thread:$0]  %s0, 128, %s15, [#allocation3]
    $region5: #{tpu_custom_call.1} parent=1 // pred_fallthru
      _
    // Predicated region
    $region6: #{tpu_custom_call.1} parent=1 // pred_check
      _
    $region7: #{tpu_custom_call.1} parent=1 // pred_check_branch
      %19 = sbr.rel (0) target = $region9
    $region8: #{tpu_custom_call.1} parent=1 // pred_region
      %20 = dma.done [#allocation3], 128
    $region9: #{tpu_custom_call.1} parent=1 // pred_fallthru
      _
    %v21 = vld [vmem:[#allocation2] sm:$0xff]
    %v23 = vlaneseq
    %v24 = vshrl.u32 %v23, 7
    %v25 = vsub.s32 0, %v24
    %v26 = vrot.slane %v21, %v25
    %v27 = vlaneseq
    %v28 = vshrl.u32 %v27, 7
    %v29 = vsub.s32 1, %v28
    %v30 = vrot.slane %v21, %v29
    %v31 = vlaneseq
    %v32 = vshrl.u32 %v31, 7
    %v33 = vsub.s32 2, %v32
    %v34 = vrot.slane %v21, %v33
    %v35 = vlaneseq
    %v36 = vshrl.u32 %v35, 7
    %v37 = vsub.s32 3, %v36
    %v38 = vrot.slane %v21, %v37
    %v39 = vlaneseq
    %v40 = vshrl.u32 %v39, 7
    %v41 = vsub.s32 4, %v40
    %v42 = vrot.slane %v21, %v41
    %v43 = vlaneseq
    %v44 = vshrl.u32 %v43, 7
    %v45 = vsub.s32 5, %v44
    %v46 = vrot.slane %v21, %v45
    %v47 = vlaneseq
    %v48 = vshrl.u32 %v47, 7
    %v49 = vsub.s32 6, %v48
    %v50 = vrot.slane %v21, %v49
    %v51 = vlaneseq
    %v52 = vshrl.u32 %v51, 7
    %v53 = vsub.s32 7, %v52
    %v54 = vrot.slane %v21, %v53
    %63 = vst [vmem:[#allocation5] sm:$0xff] %v26
    %64 = vst [vmem:[#allocation5 + $0x8] sm:$0xff] %v30
    %65 = vst [vmem:[#allocation5 + $0x10] sm:$0xff] %v34
    %66 = vst [vmem:[#allocation5 + $0x18] sm:$0xff] %v38
    %67 = vst [vmem:[#allocation5 + $0x20] sm:$0xff] %v42
    %68 = vst [vmem:[#allocation5 + $0x28] sm:$0xff] %v46
    %69 = vst [vmem:[#allocation5 + $0x30] sm:$0xff] %v50
    %70 = vst [vmem:[#allocation5 + $0x38] sm:$0xff] %v54
    %71 = vst [vmem:[#allocation5 + $0x40] sm:$0xff] %v26
    %72 = vst [vmem:[#allocation5 + $0x48] sm:$0xff] %v30
    %73 = vst [vmem:[#allocation5 + $0x50] sm:$0xff] %v34
    %74 = vst [vmem:[#allocation5 + $0x58] sm:$0xff] %v38
    %75 = vst [vmem:[#allocation5 + $0x60] sm:$0xff] %v42
    %76 = vst [vmem:[#allocation5 + $0x68] sm:$0xff] %v46
    %77 = vst [vmem:[#allocation5 + $0x70] sm:$0xff] %v50
    %78 = vst [vmem:[#allocation5 + $0x78] sm:$0xff] %v54
    %79 = vst [vmem:[#allocation5 + $0x80] sm:$0xff] %v26
    %80 = vst [vmem:[#allocation5 + $0x88] sm:$0xff] %v30
    %81 = vst [vmem:[#allocation5 + $0x90] sm:$0xff] %v34
    %82 = vst [vmem:[#allocation5 + $0x98] sm:$0xff] %v38
    %83 = vst [vmem:[#allocation5 + $0xa0] sm:$0xff] %v42
    %84 = vst [vmem:[#allocation5 + $0xa8] sm:$0xff] %v46
    %85 = vst [vmem:[#allocation5 + $0xb0] sm:$0xff] %v50
    %86 = vst [vmem:[#allocation5 + $0xb8] sm:$0xff] %v54
    %87 = vst [vmem:[#allocation5 + $0xc0] sm:$0xff] %v26
    %88 = vst [vmem:[#allocation5 + $0xc8] sm:$0xff] %v30
    %89 = vst [vmem:[#allocation5 + $0xd0] sm:$0xff] %v34
    %90 = vst [vmem:[#allocation5 + $0xd8] sm:$0xff] %v38
    %91 = vst [vmem:[#allocation5 + $0xe0] sm:$0xff] %v42
    %92 = vst [vmem:[#allocation5 + $0xe8] sm:$0xff] %v46
    %93 = vst [vmem:[#allocation5 + $0xf0] sm:$0xff] %v50
    %94 = vst [vmem:[#allocation5 + $0xf8] sm:$0xff] %v54
    %95 = vst [vmem:[#allocation5 + $0x100] sm:$0xff] %v26
    %96 = vst [vmem:[#allocation5 + $0x108] sm:$0xff] %v30
    %97 = vst [vmem:[#allocation5 + $0x110] sm:$0xff] %v34
    %98 = vst [vmem:[#allocation5 + $0x118] sm:$0xff] %v38
    %99 = vst [vmem:[#allocation5 + $0x120] sm:$0xff] %v42
    %100 = vst [vmem:[#allocation5 + $0x128] sm:$0xff] %v46
    %101 = vst [vmem:[#allocation5 + $0x130] sm:$0xff] %v50
    %102 = vst [vmem:[#allocation5 + $0x138] sm:$0xff] %v54
    %103 = vst [vmem:[#allocation5 + $0x140] sm:$0xff] %v26
    %104 = vst [vmem:[#allocation5 + $0x148] sm:$0xff] %v30
    %105 = vst [vmem:[#allocation5 + $0x150] sm:$0xff] %v34
    %106 = vst [vmem:[#allocation5 + $0x158] sm:$0xff] %v38
    %107 = vst [vmem:[#allocation5 + $0x160] sm:$0xff] %v42
    %108 = vst [vmem:[#allocation5 + $0x168] sm:$0xff] %v46
    %109 = vst [vmem:[#allocation5 + $0x170] sm:$0xff] %v50
    %110 = vst [vmem:[#allocation5 + $0x178] sm:$0xff] %v54
    %111 = vst [vmem:[#allocation5 + $0x180] sm:$0xff] %v26
    %112 = vst [vmem:[#allocation5 + $0x188] sm:$0xff] %v30
    %113 = vst [vmem:[#allocation5 + $0x190] sm:$0xff] %v34
    %114 = vst [vmem:[#allocation5 + $0x198] sm:$0xff] %v38
    %115 = vst [vmem:[#allocation5 + $0x1a0] sm:$0xff] %v42
    %116 = vst [vmem:[#allocation5 + $0x1a8] sm:$0xff] %v46
    %117 = vst [vmem:[#allocation5 + $0x1b0] sm:$0xff] %v50
    %118 = vst [vmem:[#allocation5 + $0x1b8] sm:$0xff] %v54
    %119 = vst [vmem:[#allocation5 + $0x1c0] sm:$0xff] %v26
    %120 = vst [vmem:[#allocation5 + $0x1c8] sm:$0xff] %v30
    %121 = vst [vmem:[#allocation5 + $0x1d0] sm:$0xff] %v34
    %122 = vst [vmem:[#allocation5 + $0x1d8] sm:$0xff] %v38
    %123 = vst [vmem:[#allocation5 + $0x1e0] sm:$0xff] %v42
    %124 = vst [vmem:[#allocation5 + $0x1e8] sm:$0xff] %v46
    %125 = vst [vmem:[#allocation5 + $0x1f0] sm:$0xff] %v50
    %126 = vst [vmem:[#allocation5 + $0x1f8] sm:$0xff] %v54
    // Predicated region
    $region10: #{tpu_custom_call.1} parent=1 // pred_check
      _
    $region11: #{tpu_custom_call.1} parent=1 // pred_check_branch
      %128 = sbr.rel (0) target = $region13
    $region12: #{tpu_custom_call.1} parent=1 // pred_region
      %s130 = ssub.s32 8192, 8192
      %131 = vsyncadd [#allocation4], %s130
      %s132 = sshll.u32 [#allocation5], 4
      %s133 = int_to_ptr.vmem [resolvable:$true] %s132
      %138 = dma.vmem_to_hbm [thread:$0]  %s133, 8192, %s1, [#allocation4], 1024, 1024, 64
    $region13: #{tpu_custom_call.1} parent=1 // pred_fallthru
      _
    // Predicated region
    $region14: #{tpu_custom_call.1} parent=1 // pred_check
      _
    $region15: #{tpu_custom_call.1} parent=1 // pred_check_branch
      %140 = sbr.rel (0) target = $region17
    $region16: #{tpu_custom_call.1} parent=1 // pred_region
      %141 = dma.done [#allocation4], 8192
    $region17: #{tpu_custom_call.1} parent=1 // pred_fallthru
      _
    %142 = vsyncpa [#allocation3], 1
    %143 = vsyncpa [#allocation4], 1

</llo_original>
